<compile_context>
chip_gen: v7x
topology: tpu7x:2x2x1
jax: 0.10.0
libtpu: 0.0.40
codegen_flags: <defaults>
</compile_context>

<pallas_src>
import functools

import jax
import jax.numpy as jnp
from jax.experimental import pallas as pl
from jax.experimental.pallas import tpu as pltpu


def _round_up(a, b):
    return ((a + b - 1) // b) * b


def _cdiv(a, b):
    return (a + b - 1) // b


def _sublane(dtype):
    # Native sublane packing: f32 -> 8 rows, bf16/f16 -> 16, int8/fp8 -> 32.
    itemsize = jnp.dtype(dtype).itemsize
    return max(8, 8 * (4 // max(itemsize, 1)))


# ---------------------------------------------------------------------------
# Kernels
# ---------------------------------------------------------------------------
def _scale_from_sq_norm(sq_norm, sqrt_c, min_norm):
    """tanh(sqrt_c*||u||) / (sqrt_c*||u||) with the reference clamp on ||u||.

    Clamping the squared norm at min_norm**2 (1e-30, representable in f32) is
    equivalent to clamping the norm at min_norm; all-zero rows give
    scale == 1 and output == 0, matching the reference.
    """
    sq_norm = jnp.maximum(sq_norm, min_norm * min_norm)
    inv_norm = jax.lax.rsqrt(sq_norm)          # EUP
    norm = sq_norm * inv_norm                  # clamped ||u||
    return jnp.tanh(sqrt_c * norm) * (inv_norm * (1.0 / sqrt_c))


def _expmap0_packed_kernel(x_ref, seg_ref, o_ref, *, sqrt_c, min_norm):
    # Lane-packed layout: each 128-lane row holds `group` original rows of
    # `feat` elements.  `seg` is the loop-invariant (128,128) block-diagonal
    # 0/1 matrix (hoisted input, constant block index => resident in VMEM),
    # so the only per-block VPU work is x*x and x*scale.
    x = x_ref[...].astype(jnp.float32)                        # (tm, 128)
    sq = x * x
    # Segmented sum-of-squares + broadcast back to every lane of its segment
    # in one matmul on the otherwise idle MXU.  precision=HIGHEST keeps the
    # reduction f32-accurate (multi-pass bf16 decomposition) without a manual
    # hi/lo split; the extra MXU passes are free in this HBM-bound kernel.
    sq_norm = jnp.dot(sq, seg_ref[...],
                      preferred_element_type=jnp.float32,
                      precision=jax.lax.Precision.HIGHEST)    # (tm, 128)
    scale = _scale_from_sq_norm(sq_norm, sqrt_c, min_norm)
    # NOTE: the ragged last grid block reads unspecified rows; this is safe
    # only because the reduction is strictly per packed row and OOB writes
    # are dropped by Pallas.
    o_ref[...] = (x * scale).astype(o_ref.dtype)


def _expmap0_kernel(x_ref, o_ref, *, sqrt_c, min_norm):
    # Unpacked path (D >= 128 or D does not divide 128): XLU lane reduce.
    x = x_ref[...].astype(jnp.float32)                        # (tm, D)
    sq_norm = jnp.sum(x * x, axis=-1, keepdims=True)          # (tm, 1)
    scale = _scale_from_sq_norm(sq_norm, sqrt_c, min_norm)
    o_ref[...] = (x * scale).astype(o_ref.dtype)


# ---------------------------------------------------------------------------
# Wrapper: flatten leading dims, lane-pack small feature dims, tile rows.
# ---------------------------------------------------------------------------
def _row_tiles(packed_rows, lane_width, itemsize, sublane, target_block_bytes):
    tm = max(sublane,
             (target_block_bytes // max(lane_width * itemsize, 1))
             // sublane * sublane)
    tm = min(tm, _round_up(packed_rows, sublane))
    num_tiles = _cdiv(packed_rows, tm)
    # Prefer an even number of row tiles when there is more than one (keeps
    # both v7x TensorCores busy on the tail; harmless on single-TC v5e/v6e).
    if num_tiles > 1 and num_tiles % 2 == 1:
        tm = max(sublane, _round_up(_cdiv(packed_rows, num_tiles + 1), sublane))
        num_tiles = _cdiv(packed_rows, tm)
    return tm, num_tiles


def _expmap0_rows(x2, *, sqrt_c, min_norm, target_block_bytes):
    rows, d = x2.shape
    dtype = x2.dtype
    itemsize = jnp.dtype(dtype).itemsize
    sublane = _sublane(dtype)
    compiler_params = pltpu.CompilerParams(
        dimension_semantics=("parallel",),
        # ~48 MiB: below v7x's 64 MiB physical VMEM (headroom for Mosaic
        # scratch + pipeline double-buffers); well under v5e/v6e's 128 MiB.
        vmem_limit_bytes=48 << 20,
    )

    if d < 128 and 128 % d == 0:
        group = 128 // d
    else:
        group = 1

    if group > 1:
        if rows % group != 0:
            # Avoid a full-tensor pad + slice: process the group-aligned
            # prefix with the packed kernel (free reshape) and only pad the
            # tiny (< group rows) tail for a second small call.
            n_full = (rows // group) * group
            parts = []
            if n_full:
                parts.append(_expmap0_rows(
                    x2[:n_full], sqrt_c=sqrt_c, min_norm=min_norm,
                    target_block_bytes=target_block_bytes))
            tail = x2[n_full:]
            tail_padded = jnp.pad(tail, ((0, group - tail.shape[0]), (0, 0)))
            parts.append(_expmap0_rows(
                tail_padded, sqrt_c=sqrt_c, min_norm=min_norm,
                target_block_bytes=target_block_bytes)[: tail.shape[0]])
            return jnp.concatenate(parts, axis=0)

        lane_width = 128
        packed_rows = rows // group
        xp = x2.reshape(packed_rows, lane_width)              # free reshape
        tm, num_tiles = _row_tiles(packed_rows, lane_width, itemsize, sublane,
                                   target_block_bytes)
        # Loop-invariant block-diagonal mask (1 where two lanes belong to the
        # same original row), built once and kept resident in VMEM.
        idx = jnp.arange(lane_width, dtype=jnp.int32)
        seg = (idx[:, None] // d == idx[None, :] // d).astype(jnp.float32)
        out = pl.pallas_call(
            functools.partial(_expmap0_packed_kernel,
                              sqrt_c=sqrt_c, min_norm=min_norm),
            out_shape=jax.ShapeDtypeStruct((packed_rows, lane_width), dtype),
            grid=(num_tiles,),
            in_specs=[pl.BlockSpec((tm, lane_width), lambda i: (i, 0)),
                      pl.BlockSpec((lane_width, lane_width),
                                   lambda i: (0, 0))],
            out_specs=pl.BlockSpec((tm, lane_width), lambda i: (i, 0)),
            compiler_params=compiler_params,
        )(xp, seg)
        return out.reshape(rows, d)

    # ---- unpacked path (group == 1) ----
    tm, num_tiles = _row_tiles(rows, d, itemsize, sublane, target_block_bytes)
    # TODO(synk): add a feature-axis-tiled two-pass path for very large D;
    # for now one row block must hold the full feature dimension.
    assert tm * d * itemsize <= (40 << 20), (
        f"feature dim {d} too large for a single-block row tile")
    out = pl.pallas_call(
        functools.partial(_expmap0_kernel, sqrt_c=sqrt_c, min_norm=min_norm),
        out_shape=jax.ShapeDtypeStruct((rows, d), dtype),
        grid=(num_tiles,),
        in_specs=[pl.BlockSpec((tm, d), lambda i: (i, 0))],
        out_specs=pl.BlockSpec((tm, d), lambda i: (i, 0)),
        compiler_params=compiler_params,
    )(x2)
    return out


def expmap0_pallas(x, *, c=1.0, min_norm=1e-15, target_block_bytes=4 << 20):
    """Poincare-ball expmap0 over the last axis of `x` (any leading shape)."""
    orig_shape = x.shape
    d = int(orig_shape[-1])
    rows = 1
    for s in orig_shape[:-1]:
        rows *= int(s)
    x2 = x.reshape(rows, d)
    out = _expmap0_rows(
        x2,
        sqrt_c=float(c) ** 0.5,
        min_norm=float(min_norm),
        target_block_bytes=int(target_block_bytes),
    )
    return out.reshape(orig_shape)


# ---------------------------------------------------------------------------
# Pure-JAX reference for the correctness check.
# ---------------------------------------------------------------------------
def expmap0_ref(x, *, c=1.0, min_norm=1e-15):
    xf = x.astype(jnp.float32)
    sqrt_c = float(c) ** 0.5
    norm = jnp.maximum(
        jnp.sqrt(jnp.sum(xf * xf, axis=-1, keepdims=True)), min_norm
    )
    return (jnp.tanh(sqrt_c * norm) * xf / (sqrt_c * norm)).astype(x.dtype)


if __name__ == "__main__":
    # The ExpZero module stores only the manifold; curvature c is its single
    # (fixed) parameter.
    CURVATURE = 1.0

    key = jax.random.PRNGKey(0)
    # NCHW-style activations: batch=2, channels=4, spatial=16x16; the last
    # axis (16) is the manifold/feature dimension expmap0 reduces over.
    x = jax.random.normal(key, (2, 4, 16, 16), dtype=jnp.float32) * 0.5

    out = jax.block_until_ready(expmap0_pallas(x, c=CURVATURE))
    ref = expmap0_ref(x, c=CURVATURE)

    assert out.shape == x.shape and out.dtype == x.dtype
    err = float(jnp.max(jnp.abs(out - ref)))
    assert err < 1e-5, f"max abs err {err}"
    print("KERNEL_OK")
</pallas_src>

<mosaic_0001>
module attributes {stable_mosaic.version = 11 : i64} {
  func.func @_expmap0_packed_kernel(%arg0: i32, %arg1: memref<16x128xf32, #tpu.memory_space<vmem>>, %arg2: memref<128x128xf32, #tpu.memory_space<vmem>>, %arg3: memref<16x128xf32, #tpu.memory_space<vmem>>) attributes {dimension_semantics = [#tpu.dimension_semantics<parallel>], iteration_bounds = array<i64: 1>, scalar_prefetch = 0 : i64, scratch_operands = 0 : i64, tpu.core_type = #tpu.core_type<tc>, window_params = [{transform_indices = @transform_0, window_bounds = array<i64: 16, 128>}, {pipeline_mode = #tpu.pipeline_mode<synchronous>, transform_indices = @transform_1, window_bounds = array<i64: 128, 128>}, {transform_indices = @transform_2, window_bounds = array<i64: 16, 128>}]} {
    %c0 = arith.constant 0 : index
    %c0_0 = arith.constant 0 : index
    %0 = vector.load %arg1[%c0, %c0_0] : memref<16x128xf32, #tpu.memory_space<vmem>>, vector<16x128xf32>
    %1 = arith.mulf %0, %0 : vector<16x128xf32>
    %c0_1 = arith.constant 0 : index
    %c0_2 = arith.constant 0 : index
    %2 = vector.load %arg2[%c0_1, %c0_2] : memref<128x128xf32, #tpu.memory_space<vmem>>, vector<128x128xf32>
    %cst = arith.constant dense<0.000000e+00> : vector<16x128xf32>
    %3 = tpu.matmul %1, %2, %cst {dimension_numbers = #tpu.dot_dimension_numbers<[1], [0], [0], [1], [0, 0, 1, 1], [], []>, precision = #tpu.contract_precision<fp32>} : vector<16x128xf32>, vector<128x128xf32>, vector<16x128xf32> -> vector<16x128xf32>
    %cst_3 = arith.constant 1.000000e-30 : f32
    %4 = vector.broadcast %cst_3 : f32 to vector<16x128xf32>
    %5 = arith.maximumf %3, %4 : vector<16x128xf32>
    %6 = math.rsqrt %5 : vector<16x128xf32>
    %7 = arith.mulf %5, %6 : vector<16x128xf32>
    %cst_4 = arith.constant 1.000000e+00 : f32
    %8 = vector.broadcast %cst_4 : f32 to vector<16x128xf32>
    %9 = arith.mulf %8, %7 : vector<16x128xf32>
    %10 = math.tanh %9 : vector<16x128xf32>
    %cst_5 = arith.constant 1.000000e+00 : f32
    %11 = vector.broadcast %cst_5 : f32 to vector<16x128xf32>
    %12 = arith.mulf %6, %11 : vector<16x128xf32>
    %13 = arith.mulf %10, %12 : vector<16x128xf32>
    %14 = arith.mulf %0, %13 : vector<16x128xf32>
    %c0_6 = arith.constant 0 : index
    %c0_7 = arith.constant 0 : index
    %15 = vector.load %arg3[%c0_6, %c0_7] : memref<16x128xf32, #tpu.memory_space<vmem>>, vector<16x128xf32>
    tpu.vector_store %arg3[%c0_6, %c0_7], %14 {strides = array<i32>} : memref<16x128xf32, #tpu.memory_space<vmem>>, vector<16x128xf32>,
    return
  }
  func.func @transform_0(%arg0: i32) -> (i32, i32) {
    %c0_i32 = arith.constant 0 : i32
    %c0_i32_0 = arith.constant 0 : i32
    return %arg0, %c0_i32 : i32, i32
  }
  func.func @transform_1(%arg0: i32) -> (i32, i32) {
    %c0_i32 = arith.constant 0 : i32
    %c0_i32_0 = arith.constant 0 : i32
    %c0_i32_1 = arith.constant 0 : i32
    return %c0_i32, %c0_i32_0 : i32, i32
  }
  func.func @transform_2(%arg0: i32) -> (i32, i32) {
    %c0_i32 = arith.constant 0 : i32
    %c0_i32_0 = arith.constant 0 : i32
    return %arg0, %c0_i32 : i32, i32
  }
}

</mosaic_0001>

<llo_original>
// kernel: tpu_custom_call.1
$region0: #{tpu_custom_call.1}
  #allocation0 [shape = 'u32[]', space=smem, size = 0x4, offset = 0x4, fixed_abs, tag = 'smem constant byte address 0x4 - core index']
  #allocation1 [shape = 'u32[144,128]{1,0:T(1,128)}', space=vmem, size = 0x12000, scoped, tag = 'internal scratch']
  %s0 = inlined_call_operand.hbm [shape: f32[16,128], index: 0, kind: input, shape index: {}]
  %s1 = inlined_call_operand.hbm [shape: f32[128,128], index: 1, kind: input, shape index: {}]
  %s2 = inlined_call_operand.hbm [shape: f32[16,128], index: 2, kind: output, shape index: {}]
  %s3 = sld [smem:[#allocation0]]
  $region26: #{tpu_custom_call.1} parent=0
    _
  %s5 = ssub.s32 1, %s3
  %s6 = scalar_select 0, %s5, %s3
  $region1: #{tpu_custom_call.1} parent=0
    #allocation2 [shape = 'u8[8192]{0}', space=vmem, size = 0x2000, scoped, tag = 'input window, operand 0, single buffered']
    #allocation3 [shape = 's32[1]{0}', space=sflag, size = 0x4, scoped, tag = 'scoped memory for tpu_custom_call.1']
    #allocation4 [shape = 's32[1]{0}', space=sflag, size = 0x4, scoped, tag = 'scoped memory for tpu_custom_call.1']
    #allocation5 [shape = 'u8[65536]{0}', space=vmem, size = 0x10000, scoped, tag = 'input window, operand 1, single buffered']
    #allocation6 [shape = 's32[1]{0}', space=sflag, size = 0x4, scoped, tag = 'scoped memory for tpu_custom_call.1']
    #allocation7 [shape = 'u8[8192]{0}', space=vmem, size = 0x2000, scoped, tag = 'output window, operand 0, single buffered']
    %7 = vsyncpa [#allocation3], 0
    %8 = vsyncpa [#allocation6], 0
    %9 = vsyncpa [#allocation4], 0
    // Predicated region
    $region2: #{tpu_custom_call.1} parent=1 // pred_check
      _
    $region3: #{tpu_custom_call.1} parent=1 // pred_check_branch
      %11 = sbr.rel (0) target = $region5
    $region4: #{tpu_custom_call.1} parent=1 // pred_region
      %s13 = ssub.s32 256, 256
      %14 = vsyncadd [#allocation3], %s13
      %s15 = sshll.u32 [#allocation2], 4
      %s16 = int_to_ptr.vmem [resolvable:$true] %s15
      %21 = dma.hbm_to_vmem [thread:$0]  %s0, 256, %s16, [#allocation3], 128, 128, 8
    $region5: #{tpu_custom_call.1} parent=1 // pred_fallthru
      _
    // Predicated region
    $region6: #{tpu_custom_call.1} parent=1 // pred_check
      _
    $region7: #{tpu_custom_call.1} parent=1 // pred_check_branch
      %23 = sbr.rel (0) target = $region9
    $region8: #{tpu_custom_call.1} parent=1 // pred_region
      %s25 = ssub.s32 2048, 2048
      %26 = vsyncadd [#allocation6], %s25
      %s27 = sshll.u32 [#allocation5], 4
      %s28 = int_to_ptr.vmem [resolvable:$true] %s27
      %33 = dma.hbm_to_vmem [thread:$0]  %s1, 2048, %s28, [#allocation6], 128, 128, 8
    $region9: #{tpu_custom_call.1} parent=1 // pred_fallthru
      _
    // Predicated region
    $region10: #{tpu_custom_call.1} parent=1 // pred_check
      _
    $region11: #{tpu_custom_call.1} parent=1 // pred_check_branch
      %35 = sbr.rel (0) target = $region13
    $region12: #{tpu_custom_call.1} parent=1 // pred_region
      %36 = dma.done [#allocation3], 256
    $region13: #{tpu_custom_call.1} parent=1 // pred_fallthru
      _
    // Predicated region
    $region14: #{tpu_custom_call.1} parent=1 // pred_check
      _
    $region15: #{tpu_custom_call.1} parent=1 // pred_check_branch
      %38 = sbr.rel (0) target = $region17
    $region16: #{tpu_custom_call.1} parent=1 // pred_region
      %39 = dma.done [#allocation6], 2048
    $region17: #{tpu_custom_call.1} parent=1 // pred_fallthru
      _
    %v40 = vld [vmem:[#allocation2] sm:$0xff]
    %v41 = vld [vmem:[#allocation2 + $0x8] sm:$0xff]
    %v42 = vmul.f32 %v40, %v40
    %v43 = vmul.f32 %v41, %v41
    %v44 = vld [vmem:[#allocation5] sm:$0xff]
    %v45 = vld [vmem:[#allocation5 + $0x8] sm:$0xff]
    %v46 = vld [vmem:[#allocation5 + $0x10] sm:$0xff]
    %v47 = vld [vmem:[#allocation5 + $0x18] sm:$0xff]
    %v48 = vld [vmem:[#allocation5 + $0x20] sm:$0xff]
    %v49 = vld [vmem:[#allocation5 + $0x28] sm:$0xff]
    %v50 = vld [vmem:[#allocation5 + $0x30] sm:$0xff]
    %v51 = vld [vmem:[#allocation5 + $0x38] sm:$0xff]
    %v52 = vld [vmem:[#allocation5 + $0x40] sm:$0xff]
    %v53 = vld [vmem:[#allocation5 + $0x48] sm:$0xff]
    %v54 = vld [vmem:[#allocation5 + $0x50] sm:$0xff]
    %v55 = vld [vmem:[#allocation5 + $0x58] sm:$0xff]
    %v56 = vld [vmem:[#allocation5 + $0x60] sm:$0xff]
    %v57 = vld [vmem:[#allocation5 + $0x68] sm:$0xff]
    %v58 = vld [vmem:[#allocation5 + $0x70] sm:$0xff]
    %v59 = vld [vmem:[#allocation5 + $0x78] sm:$0xff]
    %60 = vmatprep.subr.mxu0 0.0
    %v61 = vand.u32 %v44, 4294901760
    %62 = vmatpush1.msra.mxu0 %v61
    %63 = vmatprep.subr.mxu0 0.0
    %v64 = vand.u32 %v45, 4294901760
    %65 = vmatpush1.msra.mxu0 %v64
    %66 = vmatprep.subr.mxu0 0.0
    %v67 = vand.u32 %v46, 4294901760
    %68 = vmatpush1.msra.mxu0 %v67
    %69 = vmatprep.subr.mxu0 0.0
    %v70 = vand.u32 %v47, 4294901760
    %71 = vmatpush1.msra.mxu0 %v70
    %72 = vmatprep.subr.mxu0 0.0
    %v73 = vand.u32 %v48, 4294901760
    %74 = vmatpush1.msra.mxu0 %v73
    %75 = vmatprep.subr.mxu0 0.0
    %v76 = vand.u32 %v49, 4294901760
    %77 = vmatpush1.msra.mxu0 %v76
    %78 = vmatprep.subr.mxu0 0.0
    %v79 = vand.u32 %v50, 4294901760
    %80 = vmatpush1.msra.mxu0 %v79
    %81 = vmatprep.subr.mxu0 0.0
    %v82 = vand.u32 %v51, 4294901760
    %83 = vmatpush1.msra.mxu0 %v82
    %84 = vmatprep.subr.mxu0 0.0
    %v85 = vand.u32 %v52, 4294901760
    %86 = vmatpush1.msra.mxu0 %v85
    %87 = vmatprep.subr.mxu0 0.0
    %v88 = vand.u32 %v53, 4294901760
    %89 = vmatpush1.msra.mxu0 %v88
    %90 = vmatprep.subr.mxu0 0.0
    %v91 = vand.u32 %v54, 4294901760
    %92 = vmatpush1.msra.mxu0 %v91
    %93 = vmatprep.subr.mxu0 0.0
    %v94 = vand.u32 %v55, 4294901760
    %95 = vmatpush1.msra.mxu0 %v94
    %96 = vmatprep.subr.mxu0 0.0
    %v97 = vand.u32 %v56, 4294901760
    %98 = vmatpush1.msra.mxu0 %v97
    %99 = vmatprep.subr.mxu0 0.0
    %v100 = vand.u32 %v57, 4294901760
    %101 = vmatpush1.msra.mxu0 %v100
    %102 = vmatprep.subr.mxu0 0.0
    %v103 = vand.u32 %v58, 4294901760
    %104 = vmatpush1.msra.mxu0 %v103
    %105 = vmatprep.subr.mxu0 0.0
    %v106 = vand.u32 %v59, 4294901760
    %107 = vmatpush1.msra.mxu0 %v106
    %108 = vmatprep.subr.mxu0 0.0
    %109 = vmatpush1.msra.mxu0 0.0
    %110 = vmatprep.subr.mxu0 0.0
    %111 = vmatpush1.msra.mxu0 0.0
    %112 = vmatprep.subr.mxu0 0.0
    %113 = vmatpush1.msra.mxu0 0.0
    %114 = vmatprep.subr.mxu0 0.0
    %115 = vmatpush1.msra.mxu0 0.0
    %116 = vmatprep.subr.mxu0 0.0
    %117 = vmatpush1.msra.mxu0 0.0
    %118 = vmatprep.subr.mxu0 0.0
    %119 = vmatpush1.msra.mxu0 0.0
    %120 = vmatprep.subr.mxu0 0.0
    %121 = vmatpush1.msra.mxu0 0.0
    %122 = vmatprep.subr.mxu0 0.0
    %123 = vmatpush1.msra.mxu0 0.0
    %124 = vmatprep.subr.mxu0 0.0
    %125 = vmatpush1.msra.mxu0 0.0
    %126 = vmatprep.subr.mxu0 0.0
    %127 = vmatpush1.msra.mxu0 0.0
    %128 = vmatprep.subr.mxu0 0.0
    %129 = vmatpush1.msra.mxu0 0.0
    %130 = vmatprep.subr.mxu0 0.0
    %131 = vmatpush1.msra.mxu0 0.0
    %132 = vmatprep.subr.mxu0 0.0
    %133 = vmatpush1.msra.mxu0 0.0
    %134 = vmatprep.subr.mxu0 0.0
    %135 = vmatpush1.msra.mxu0 0.0
    %136 = vmatprep.subr.mxu0 0.0
    %137 = vmatpush1.msra.mxu0 0.0
    %138 = vmatprep.subr.mxu0 0.0
    %139 = vmatpush1.msra.mxu0 0.0
    %140 = vmatprep.mubr.f32.mxu0 0.0
    %v141 = vand.u32 %v42, 4294901760
    %v142 = vsub.f32 %v42, %v141
    %v143 = vand.u32 %v142, 4294901760
    %v144 = vsub.f32 %v142, %v143
    %v145 = vand.u32 %v144, 4294901760
    %146 = vmatmul.mubr.f32.gmra.mrb[0].mxu0 %v145
    %v147 = vpop.f32.mrb[0].mxu0
    %v148 = vadd.f32 0.0, %v147
    %v149 = vpop.f32.mrb[0].mxu0
    %150 = vmatprep.mubr.f32.mxu0 0.0
    %v151 = vand.u32 %v43, 4294901760
    %v152 = vsub.f32 %v43, %v151
    %v153 = vand.u32 %v152, 4294901760
    %v154 = vsub.f32 %v152, %v153
    %v155 = vand.u32 %v154, 4294901760
    %156 = vmatmul.mubr.f32.gmra.mrb[0].mxu0 %v155
    %v157 = vpop.f32.mrb[0].mxu0
    %v158 = vadd.f32 0.0, %v157
    %v159 = vpop.f32.mrb[0].mxu0
    %160 = vdwg.mxu0
    %161 = vmatprep.subr.mxu0 0.0
    %v162 = vand.u32 %v44, 4294901760
    %v163 = vsub.f32 %v44, %v162
    %v164 = vand.u32 %v163, 4294901760
    %v165 = vsub.f32 %v163, %v164
    %v166 = vand.u32 %v165, 4294901760
    %167 = vmatpush1.msra.mxu0 %v166
    %168 = vmatprep.subr.mxu0 0.0
    %v169 = vand.u32 %v45, 4294901760
    %v170 = vsub.f32 %v45, %v169
    %v171 = vand.u32 %v170, 4294901760
    %v172 = vsub.f32 %v170, %v171
    %v173 = vand.u32 %v172, 4294901760
    %174 = vmatpush1.msra.mxu0 %v173
    %175 = vmatprep.subr.mxu0 0.0
    %v176 = vand.u32 %v46, 4294901760
    %v177 = vsub.f32 %v46, %v176
    %v178 = vand.u32 %v177, 4294901760
    %v179 = vsub.f32 %v177, %v178
    %v180 = vand.u32 %v179, 4294901760
    %181 = vmatpush1.msra.mxu0 %v180
    %182 = vmatprep.subr.mxu0 0.0
    %v183 = vand.u32 %v47, 4294901760
    %v184 = vsub.f32 %v47, %v183
    %v185 = vand.u32 %v184, 4294901760
    %v186 = vsub.f32 %v184, %v185
    %v187 = vand.u32 %v186, 4294901760
    %188 = vmatpush1.msra.mxu0 %v187
    %189 = vmatprep.subr.mxu0 0.0
    %v190 = vand.u32 %v48, 4294901760
    %v191 = vsub.f32 %v48, %v190
    %v192 = vand.u32 %v191, 4294901760
    %v193 = vsub.f32 %v191, %v192
    %v194 = vand.u32 %v193, 4294901760
    %195 = vmatpush1.msra.mxu0 %v194
    %196 = vmatprep.subr.mxu0 0.0
    %v197 = vand.u32 %v49, 4294901760
    %v198 = vsub.f32 %v49, %v197
    %v199 = vand.u32 %v198, 4294901760
    %v200 = vsub.f32 %v198, %v199
    %v201 = vand.u32 %v200, 4294901760
    %202 = vmatpush1.msra.mxu0 %v201
    %203 = vmatprep.subr.mxu0 0.0
    %v204 = vand.u32 %v50, 4294901760
    %v205 = vsub.f32 %v50, %v204
    %v206 = vand.u32 %v205, 4294901760
    %v207 = vsub.f32 %v205, %v206
    %v208 = vand.u32 %v207, 4294901760
    %209 = vmatpush1.msra.mxu0 %v208
    %210 = vmatprep.subr.mxu0 0.0
    %v211 = vand.u32 %v51, 4294901760
    %v212 = vsub.f32 %v51, %v211
    %v213 = vand.u32 %v212, 4294901760
    %v214 = vsub.f32 %v212, %v213
    %v215 = vand.u32 %v214, 4294901760
    %216 = vmatpush1.msra.mxu0 %v215
    %217 = vmatprep.subr.mxu0 0.0
    %v218 = vand.u32 %v52, 4294901760
    %v219 = vsub.f32 %v52, %v218
    %v220 = vand.u32 %v219, 4294901760
    %v221 = vsub.f32 %v219, %v220
    %v222 = vand.u32 %v221, 4294901760
    %223 = vmatpush1.msra.mxu0 %v222
    %224 = vmatprep.subr.mxu0 0.0
    %v225 = vand.u32 %v53, 4294901760
    %v226 = vsub.f32 %v53, %v225
    %v227 = vand.u32 %v226, 4294901760
    %v228 = vsub.f32 %v226, %v227
    %v229 = vand.u32 %v228, 4294901760
    %230 = vmatpush1.msra.mxu0 %v229
    %231 = vmatprep.subr.mxu0 0.0
    %v232 = vand.u32 %v54, 4294901760
    %v233 = vsub.f32 %v54, %v232
    %v234 = vand.u32 %v233, 4294901760
    %v235 = vsub.f32 %v233, %v234
    %v236 = vand.u32 %v235, 4294901760
    %237 = vmatpush1.msra.mxu0 %v236
    %238 = vmatprep.subr.mxu0 0.0
    %v239 = vand.u32 %v55, 4294901760
    %v240 = vsub.f32 %v55, %v239
    %v241 = vand.u32 %v240, 4294901760
    %v242 = vsub.f32 %v240, %v241
    %v243 = vand.u32 %v242, 4294901760
    %244 = vmatpush1.msra.mxu0 %v243
    %245 = vmatprep.subr.mxu0 0.0
    %v246 = vand.u32 %v56, 4294901760
    %v247 = vsub.f32 %v56, %v246
    %v248 = vand.u32 %v247, 4294901760
    %v249 = vsub.f32 %v247, %v248
    %v250 = vand.u32 %v249, 4294901760
    %251 = vmatpush1.msra.mxu0 %v250
    %252 = vmatprep.subr.mxu0 0.0
    %v253 = vand.u32 %v57, 4294901760
    %v254 = vsub.f32 %v57, %v253
    %v255 = vand.u32 %v254, 4294901760
    %v256 = vsub.f32 %v254, %v255
    %v257 = vand.u32 %v256, 4294901760
    %258 = vmatpush1.msra.mxu0 %v257
    %259 = vmatprep.subr.mxu0 0.0
    %v260 = vand.u32 %v58, 4294901760
    %v261 = vsub.f32 %v58, %v260
    %v262 = vand.u32 %v261, 4294901760
    %v263 = vsub.f32 %v261, %v262
    %v264 = vand.u32 %v263, 4294901760
    %265 = vmatpush1.msra.mxu0 %v264
    %266 = vmatprep.subr.mxu0 0.0
    %v267 = vand.u32 %v59, 4294901760
    %v268 = vsub.f32 %v59, %v267
    %v269 = vand.u32 %v268, 4294901760
    %v270 = vsub.f32 %v268, %v269
    %v271 = vand.u32 %v270, 4294901760
    %272 = vmatpush1.msra.mxu0 %v271
    %273 = vmatprep.subr.mxu0 0.0
    %274 = vmatpush1.msra.mxu0 0.0
    %275 = vmatprep.subr.mxu0 0.0
    %276 = vmatpush1.msra.mxu0 0.0
    %277 = vmatprep.subr.mxu0 0.0
    %278 = vmatpush1.msra.mxu0 0.0
    %279 = vmatprep.subr.mxu0 0.0
    %280 = vmatpush1.msra.mxu0 0.0
    %281 = vmatprep.subr.mxu0 0.0
    %282 = vmatpush1.msra.mxu0 0.0
    %283 = vmatprep.subr.mxu0 0.0
    %284 = vmatpush1.msra.mxu0 0.0
    %285 = vmatprep.subr.mxu0 0.0
    %286 = vmatpush1.msra.mxu0 0.0
    %287 = vmatprep.subr.mxu0 0.0
    %288 = vmatpush1.msra.mxu0 0.0
    %289 = vmatprep.subr.mxu0 0.0
    %290 = vmatpush1.msra.mxu0 0.0
    %291 = vmatprep.subr.mxu0 0.0
    %292 = vmatpush1.msra.mxu0 0.0
    %293 = vmatprep.subr.mxu0 0.0
    %294 = vmatpush1.msra.mxu0 0.0
    %295 = vmatprep.subr.mxu0 0.0
    %296 = vmatpush1.msra.mxu0 0.0
    %297 = vmatprep.subr.mxu0 0.0
    %298 = vmatpush1.msra.mxu0 0.0
    %299 = vmatprep.subr.mxu0 0.0
    %300 = vmatpush1.msra.mxu0 0.0
    %301 = vmatprep.subr.mxu0 0.0
    %302 = vmatpush1.msra.mxu0 0.0
    %303 = vmatprep.subr.mxu0 0.0
    %304 = vmatpush1.msra.mxu0 0.0
    %305 = vmatprep.mubr.f32.mxu0 0.0
    %v306 = vand.u32 %v42, 4294901760
    %307 = vmatmul.mubr.f32.gmra.mrb[0].mxu0 %v306
    %v308 = vpop.f32.mrb[0].mxu0
    %v309 = vadd.f32 %v148, %v308
    %v310 = vpop.f32.mrb[0].mxu0
    %311 = vmatprep.mubr.f32.mxu0 0.0
    %v312 = vand.u32 %v43, 4294901760
    %313 = vmatmul.mubr.f32.gmra.mrb[0].mxu0 %v312
    %v314 = vpop.f32.mrb[0].mxu0
    %v315 = vadd.f32 %v158, %v314
    %v316 = vpop.f32.mrb[0].mxu0
    %317 = vdwg.mxu0
    %318 = vmatprep.subr.mxu0 0.0
    %v319 = vand.u32 %v44, 4294901760
    %v320 = vsub.f32 %v44, %v319
    %321 = vmatpush1.msra.mxu0 %v320
    %322 = vmatprep.subr.mxu0 0.0
    %v323 = vand.u32 %v45, 4294901760
    %v324 = vsub.f32 %v45, %v323
    %325 = vmatpush1.msra.mxu0 %v324
    %326 = vmatprep.subr.mxu0 0.0
    %v327 = vand.u32 %v46, 4294901760
    %v328 = vsub.f32 %v46, %v327
    %329 = vmatpush1.msra.mxu0 %v328
    %330 = vmatprep.subr.mxu0 0.0
    %v331 = vand.u32 %v47, 4294901760
    %v332 = vsub.f32 %v47, %v331
    %333 = vmatpush1.msra.mxu0 %v332
    %334 = vmatprep.subr.mxu0 0.0
    %v335 = vand.u32 %v48, 4294901760
    %v336 = vsub.f32 %v48, %v335
    %337 = vmatpush1.msra.mxu0 %v336
    %338 = vmatprep.subr.mxu0 0.0
    %v339 = vand.u32 %v49, 4294901760
    %v340 = vsub.f32 %v49, %v339
    %341 = vmatpush1.msra.mxu0 %v340
    %342 = vmatprep.subr.mxu0 0.0
    %v343 = vand.u32 %v50, 4294901760
    %v344 = vsub.f32 %v50, %v343
    %345 = vmatpush1.msra.mxu0 %v344
    %346 = vmatprep.subr.mxu0 0.0
    %v347 = vand.u32 %v51, 4294901760
    %v348 = vsub.f32 %v51, %v347
    %349 = vmatpush1.msra.mxu0 %v348
    %350 = vmatprep.subr.mxu0 0.0
    %v351 = vand.u32 %v52, 4294901760
    %v352 = vsub.f32 %v52, %v351
    %353 = vmatpush1.msra.mxu0 %v352
    %354 = vmatprep.subr.mxu0 0.0
    %v355 = vand.u32 %v53, 4294901760
    %v356 = vsub.f32 %v53, %v355
    %357 = vmatpush1.msra.mxu0 %v356
    %358 = vmatprep.subr.mxu0 0.0
    %v359 = vand.u32 %v54, 4294901760
    %v360 = vsub.f32 %v54, %v359
    %361 = vmatpush1.msra.mxu0 %v360
    %362 = vmatprep.subr.mxu0 0.0
    %v363 = vand.u32 %v55, 4294901760
    %v364 = vsub.f32 %v55, %v363
    %365 = vmatpush1.msra.mxu0 %v364
    %366 = vmatprep.subr.mxu0 0.0
    %v367 = vand.u32 %v56, 4294901760
    %v368 = vsub.f32 %v56, %v367
    %369 = vmatpush1.msra.mxu0 %v368
    %370 = vmatprep.subr.mxu0 0.0
    %v371 = vand.u32 %v57, 4294901760
    %v372 = vsub.f32 %v57, %v371
    %373 = vmatpush1.msra.mxu0 %v372
    %374 = vmatprep.subr.mxu0 0.0
    %v375 = vand.u32 %v58, 4294901760
    %v376 = vsub.f32 %v58, %v375
    %377 = vmatpush1.msra.mxu0 %v376
    %378 = vmatprep.subr.mxu0 0.0
    %v379 = vand.u32 %v59, 4294901760
    %v380 = vsub.f32 %v59, %v379
    %381 = vmatpush1.msra.mxu0 %v380
    %382 = vmatprep.subr.mxu0 0.0
    %383 = vmatpush1.msra.mxu0 0.0
    %384 = vmatprep.subr.mxu0 0.0
    %385 = vmatpush1.msra.mxu0 0.0
    %386 = vmatprep.subr.mxu0 0.0
    %387 = vmatpush1.msra.mxu0 0.0
    %388 = vmatprep.subr.mxu0 0.0
    %389 = vmatpush1.msra.mxu0 0.0
    %390 = vmatprep.subr.mxu0 0.0
    %391 = vmatpush1.msra.mxu0 0.0
    %392 = vmatprep.subr.mxu0 0.0
    %393 = vmatpush1.msra.mxu0 0.0
    %394 = vmatprep.subr.mxu0 0.0
    %395 = vmatpush1.msra.mxu0 0.0
    %396 = vmatprep.subr.mxu0 0.0
    %397 = vmatpush1.msra.mxu0 0.0
    %398 = vmatprep.subr.mxu0 0.0
    %399 = vmatpush1.msra.mxu0 0.0
    %400 = vmatprep.subr.mxu0 0.0
    %401 = vmatpush1.msra.mxu0 0.0
    %402 = vmatprep.subr.mxu0 0.0
    %403 = vmatpush1.msra.mxu0 0.0
    %404 = vmatprep.subr.mxu0 0.0
    %405 = vmatpush1.msra.mxu0 0.0
    %406 = vmatprep.subr.mxu0 0.0
    %407 = vmatpush1.msra.mxu0 0.0
    %408 = vmatprep.subr.mxu0 0.0
    %409 = vmatpush1.msra.mxu0 0.0
    %410 = vmatprep.subr.mxu0 0.0
    %411 = vmatpush1.msra.mxu0 0.0
    %412 = vmatprep.subr.mxu0 0.0
    %413 = vmatpush1.msra.mxu0 0.0
    %414 = vmatprep.mubr.f32.mxu0 0.0
    %v415 = vand.u32 %v42, 4294901760
    %v416 = vsub.f32 %v42, %v415
    %417 = vmatmul.mubr.f32.gmra.mrb[0].mxu0 %v416
    %v418 = vpop.f32.mrb[0].mxu0
    %v419 = vadd.f32 %v309, %v418
    %v420 = vpop.f32.mrb[0].mxu0
    %421 = vmatprep.mubr.f32.mxu0 0.0
    %v422 = vand.u32 %v43, 4294901760
    %v423 = vsub.f32 %v43, %v422
    %424 = vmatmul.mubr.f32.gmra.mrb[0].mxu0 %v423
    %v425 = vpop.f32.mrb[0].mxu0
    %v426 = vadd.f32 %v315, %v425
    %v427 = vpop.f32.mrb[0].mxu0
    %428 = vdwg.mxu0
    %429 = vmatprep.subr.mxu0 0.0
    %v430 = vand.u32 %v44, 4294901760
    %431 = vmatpush1.msra.mxu0 %v430
    %432 = vmatprep.subr.mxu0 0.0
    %v433 = vand.u32 %v45, 4294901760
    %434 = vmatpush1.msra.mxu0 %v433
    %435 = vmatprep.subr.mxu0 0.0
    %v436 = vand.u32 %v46, 4294901760
    %437 = vmatpush1.msra.mxu0 %v436
    %438 = vmatprep.subr.mxu0 0.0
    %v439 = vand.u32 %v47, 4294901760
    %440 = vmatpush1.msra.mxu0 %v439
    %441 = vmatprep.subr.mxu0 0.0
    %v442 = vand.u32 %v48, 4294901760
    %443 = vmatpush1.msra.mxu0 %v442
    %444 = vmatprep.subr.mxu0 0.0
    %v445 = vand.u32 %v49, 4294901760
    %446 = vmatpush1.msra.mxu0 %v445
    %447 = vmatprep.subr.mxu0 0.0
    %v448 = vand.u32 %v50, 4294901760
    %449 = vmatpush1.msra.mxu0 %v448
    %450 = vmatprep.subr.mxu0 0.0
    %v451 = vand.u32 %v51, 4294901760
    %452 = vmatpush1.msra.mxu0 %v451
    %453 = vmatprep.subr.mxu0 0.0
    %v454 = vand.u32 %v52, 4294901760
    %455 = vmatpush1.msra.mxu0 %v454
    %456 = vmatprep.subr.mxu0 0.0
    %v457 = vand.u32 %v53, 4294901760
    %458 = vmatpush1.msra.mxu0 %v457
    %459 = vmatprep.subr.mxu0 0.0
    %v460 = vand.u32 %v54, 4294901760
    %461 = vmatpush1.msra.mxu0 %v460
    %462 = vmatprep.subr.mxu0 0.0
    %v463 = vand.u32 %v55, 4294901760
    %464 = vmatpush1.msra.mxu0 %v463
    %465 = vmatprep.subr.mxu0 0.0
    %v466 = vand.u32 %v56, 4294901760
    %467 = vmatpush1.msra.mxu0 %v466
    %468 = vmatprep.subr.mxu0 0.0
    %v469 = vand.u32 %v57, 4294901760
    %470 = vmatpush1.msra.mxu0 %v469
    %471 = vmatprep.subr.mxu0 0.0
    %v472 = vand.u32 %v58, 4294901760
    %473 = vmatpush1.msra.mxu0 %v472
    %474 = vmatprep.subr.mxu0 0.0
    %v475 = vand.u32 %v59, 4294901760
    %476 = vmatpush1.msra.mxu0 %v475
    %477 = vmatprep.subr.mxu0 0.0
    %478 = vmatpush1.msra.mxu0 0.0
    %479 = vmatprep.subr.mxu0 0.0
    %480 = vmatpush1.msra.mxu0 0.0
    %481 = vmatprep.subr.mxu0 0.0
    %482 = vmatpush1.msra.mxu0 0.0
    %483 = vmatprep.subr.mxu0 0.0
    %484 = vmatpush1.msra.mxu0 0.0
    %485 = vmatprep.subr.mxu0 0.0
    %486 = vmatpush1.msra.mxu0 0.0
    %487 = vmatprep.subr.mxu0 0.0
    %488 = vmatpush1.msra.mxu0 0.0
    %489 = vmatprep.subr.mxu0 0.0
    %490 = vmatpush1.msra.mxu0 0.0
    %491 = vmatprep.subr.mxu0 0.0
    %492 = vmatpush1.msra.mxu0 0.0
    %493 = vmatprep.subr.mxu0 0.0
    %494 = vmatpush1.msra.mxu0 0.0
    %495 = vmatprep.subr.mxu0 0.0
    %496 = vmatpush1.msra.mxu0 0.0
    %497 = vmatprep.subr.mxu0 0.0
    %498 = vmatpush1.msra.mxu0 0.0
    %499 = vmatprep.subr.mxu0 0.0
    %500 = vmatpush1.msra.mxu0 0.0
    %501 = vmatprep.subr.mxu0 0.0
    %502 = vmatpush1.msra.mxu0 0.0
    %503 = vmatprep.subr.mxu0 0.0
    %504 = vmatpush1.msra.mxu0 0.0
    %505 = vmatprep.subr.mxu0 0.0
    %506 = vmatpush1.msra.mxu0 0.0
    %507 = vmatprep.subr.mxu0 0.0
    %508 = vmatpush1.msra.mxu0 0.0
    %509 = vmatprep.mubr.f32.mxu0 0.0
    %v510 = vand.u32 %v42, 4294901760
    %v511 = vsub.f32 %v42, %v510
    %v512 = vand.u32 %v511, 4294901760
    %513 = vmatmul.mubr.f32.gmra.mrb[0].mxu0 %v512
    %v514 = vpop.f32.mrb[0].mxu0
    %v515 = vadd.f32 %v419, %v514
    %v516 = vpop.f32.mrb[0].mxu0
    %517 = vmatprep.mubr.f32.mxu0 0.0
    %v518 = vand.u32 %v43, 4294901760
    %v519 = vsub.f32 %v43, %v518
    %v520 = vand.u32 %v519, 4294901760
    %521 = vmatmul.mubr.f32.gmra.mrb[0].mxu0 %v520
    %v522 = vpop.f32.mrb[0].mxu0
    %v523 = vadd.f32 %v426, %v522
    %v524 = vpop.f32.mrb[0].mxu0
    %525 = vdwg.mxu0
    %526 = vmatprep.subr.mxu0 0.0
    %v527 = vand.u32 %v44, 4294901760
    %v528 = vsub.f32 %v44, %v527
    %v529 = vand.u32 %v528, 4294901760
    %530 = vmatpush1.msra.mxu0 %v529
    %531 = vmatprep.subr.mxu0 0.0
    %v532 = vand.u32 %v45, 4294901760
    %v533 = vsub.f32 %v45, %v532
    %v534 = vand.u32 %v533, 4294901760
    %535 = vmatpush1.msra.mxu0 %v534
    %536 = vmatprep.subr.mxu0 0.0
    %v537 = vand.u32 %v46, 4294901760
    %v538 = vsub.f32 %v46, %v537
    %v539 = vand.u32 %v538, 4294901760
    %540 = vmatpush1.msra.mxu0 %v539
    %541 = vmatprep.subr.mxu0 0.0
    %v542 = vand.u32 %v47, 4294901760
    %v543 = vsub.f32 %v47, %v542
    %v544 = vand.u32 %v543, 4294901760
    %545 = vmatpush1.msra.mxu0 %v544
    %546 = vmatprep.subr.mxu0 0.0
    %v547 = vand.u32 %v48, 4294901760
    %v548 = vsub.f32 %v48, %v547
    %v549 = vand.u32 %v548, 4294901760
    %550 = vmatpush1.msra.mxu0 %v549
    %551 = vmatprep.subr.mxu0 0.0
    %v552 = vand.u32 %v49, 4294901760
    %v553 = vsub.f32 %v49, %v552
    %v554 = vand.u32 %v553, 4294901760
    %555 = vmatpush1.msra.mxu0 %v554
    %556 = vmatprep.subr.mxu0 0.0
    %v557 = vand.u32 %v50, 4294901760
    %v558 = vsub.f32 %v50, %v557
    %v559 = vand.u32 %v558, 4294901760
    %560 = vmatpush1.msra.mxu0 %v559
    %561 = vmatprep.subr.mxu0 0.0
    %v562 = vand.u32 %v51, 4294901760
    %v563 = vsub.f32 %v51, %v562
    %v564 = vand.u32 %v563, 4294901760
    %565 = vmatpush1.msra.mxu0 %v564
    %566 = vmatprep.subr.mxu0 0.0
    %v567 = vand.u32 %v52, 4294901760
    %v568 = vsub.f32 %v52, %v567
    %v569 = vand.u32 %v568, 4294901760
    %570 = vmatpush1.msra.mxu0 %v569
    %571 = vmatprep.subr.mxu0 0.0
    %v572 = vand.u32 %v53, 4294901760
    %v573 = vsub.f32 %v53, %v572
    %v574 = vand.u32 %v573, 4294901760
    %575 = vmatpush1.msra.mxu0 %v574
    %576 = vmatprep.subr.mxu0 0.0
    %v577 = vand.u32 %v54, 4294901760
    %v578 = vsub.f32 %v54, %v577
    %v579 = vand.u32 %v578, 4294901760
    %580 = vmatpush1.msra.mxu0 %v579
    %581 = vmatprep.subr.mxu0 0.0
    %v582 = vand.u32 %v55, 4294901760
    %v583 = vsub.f32 %v55, %v582
    %v584 = vand.u32 %v583, 4294901760
    %585 = vmatpush1.msra.mxu0 %v584
    %586 = vmatprep.subr.mxu0 0.0
    %v587 = vand.u32 %v56, 4294901760
    %v588 = vsub.f32 %v56, %v587
    %v589 = vand.u32 %v588, 4294901760
    %590 = vmatpush1.msra.mxu0 %v589
    %591 = vmatprep.subr.mxu0 0.0
    %v592 = vand.u32 %v57, 4294901760
    %v593 = vsub.f32 %v57, %v592
    %v594 = vand.u32 %v593, 4294901760
    %595 = vmatpush1.msra.mxu0 %v594
    %596 = vmatprep.subr.mxu0 0.0
    %v597 = vand.u32 %v58, 4294901760
    %v598 = vsub.f32 %v58, %v597
    %v599 = vand.u32 %v598, 4294901760
    %600 = vmatpush1.msra.mxu0 %v599
    %601 = vmatprep.subr.mxu0 0.0
    %v602 = vand.u32 %v59, 4294901760
    %v603 = vsub.f32 %v59, %v602
    %v604 = vand.u32 %v603, 4294901760
    %605 = vmatpush1.msra.mxu0 %v604
    %606 = vmatprep.subr.mxu0 0.0
    %607 = vmatpush1.msra.mxu0 0.0
    %608 = vmatprep.subr.mxu0 0.0
    %609 = vmatpush1.msra.mxu0 0.0
    %610 = vmatprep.subr.mxu0 0.0
    %611 = vmatpush1.msra.mxu0 0.0
    %612 = vmatprep.subr.mxu0 0.0
    %613 = vmatpush1.msra.mxu0 0.0
    %614 = vmatprep.subr.mxu0 0.0
    %615 = vmatpush1.msra.mxu0 0.0
    %616 = vmatprep.subr.mxu0 0.0
    %617 = vmatpush1.msra.mxu0 0.0
    %618 = vmatprep.subr.mxu0 0.0
    %619 = vmatpush1.msra.mxu0 0.0
    %620 = vmatprep.subr.mxu0 0.0
    %621 = vmatpush1.msra.mxu0 0.0
    %622 = vmatprep.subr.mxu0 0.0
    %623 = vmatpush1.msra.mxu0 0.0
    %624 = vmatprep.subr.mxu0 0.0
    %625 = vmatpush1.msra.mxu0 0.0
    %626 = vmatprep.subr.mxu0 0.0
    %627 = vmatpush1.msra.mxu0 0.0
    %628 = vmatprep.subr.mxu0 0.0
    %629 = vmatpush1.msra.mxu0 0.0
    %630 = vmatprep.subr.mxu0 0.0
    %631 = vmatpush1.msra.mxu0 0.0
    %632 = vmatprep.subr.mxu0 0.0
    %633 = vmatpush1.msra.mxu0 0.0
    %634 = vmatprep.subr.mxu0 0.0
    %635 = vmatpush1.msra.mxu0 0.0
    %636 = vmatprep.subr.mxu0 0.0
    %637 = vmatpush1.msra.mxu0 0.0
    %638 = vmatprep.mubr.f32.mxu0 0.0
    %v639 = vand.u32 %v42, 4294901760
    %640 = vmatmul.mubr.f32.gmra.mrb[0].mxu0 %v639
    %v641 = vpop.f32.mrb[0].mxu0
    %v642 = vadd.f32 %v515, %v641
    %v643 = vpop.f32.mrb[0].mxu0
    %644 = vmatprep.mubr.f32.mxu0 0.0
    %v645 = vand.u32 %v43, 4294901760
    %646 = vmatmul.mubr.f32.gmra.mrb[0].mxu0 %v645
    %v647 = vpop.f32.mrb[0].mxu0
    %v648 = vadd.f32 %v523, %v647
    %v649 = vpop.f32.mrb[0].mxu0
    %650 = vdwg.mxu0
    %651 = vmatprep.subr.mxu0 0.0
    %v652 = vand.u32 %v44, 4294901760
    %653 = vmatpush1.msra.mxu0 %v652
    %654 = vmatprep.subr.mxu0 0.0
    %v655 = vand.u32 %v45, 4294901760
    %656 = vmatpush1.msra.mxu0 %v655
    %657 = vmatprep.subr.mxu0 0.0
    %v658 = vand.u32 %v46, 4294901760
    %659 = vmatpush1.msra.mxu0 %v658
    %660 = vmatprep.subr.mxu0 0.0
    %v661 = vand.u32 %v47, 4294901760
    %662 = vmatpush1.msra.mxu0 %v661
    %663 = vmatprep.subr.mxu0 0.0
    %v664 = vand.u32 %v48, 4294901760
    %665 = vmatpush1.msra.mxu0 %v664
    %666 = vmatprep.subr.mxu0 0.0
    %v667 = vand.u32 %v49, 4294901760
    %668 = vmatpush1.msra.mxu0 %v667
    %669 = vmatprep.subr.mxu0 0.0
    %v670 = vand.u32 %v50, 4294901760
    %671 = vmatpush1.msra.mxu0 %v670
    %672 = vmatprep.subr.mxu0 0.0
    %v673 = vand.u32 %v51, 4294901760
    %674 = vmatpush1.msra.mxu0 %v673
    %675 = vmatprep.subr.mxu0 0.0
    %v676 = vand.u32 %v52, 4294901760
    %677 = vmatpush1.msra.mxu0 %v676
    %678 = vmatprep.subr.mxu0 0.0
    %v679 = vand.u32 %v53, 4294901760
    %680 = vmatpush1.msra.mxu0 %v679
    %681 = vmatprep.subr.mxu0 0.0
    %v682 = vand.u32 %v54, 4294901760
    %683 = vmatpush1.msra.mxu0 %v682
    %684 = vmatprep.subr.mxu0 0.0
    %v685 = vand.u32 %v55, 4294901760
    %686 = vmatpush1.msra.mxu0 %v685
    %687 = vmatprep.subr.mxu0 0.0
    %v688 = vand.u32 %v56, 4294901760
    %689 = vmatpush1.msra.mxu0 %v688
    %690 = vmatprep.subr.mxu0 0.0
    %v691 = vand.u32 %v57, 4294901760
    %692 = vmatpush1.msra.mxu0 %v691
    %693 = vmatprep.subr.mxu0 0.0
    %v694 = vand.u32 %v58, 4294901760
    %695 = vmatpush1.msra.mxu0 %v694
    %696 = vmatprep.subr.mxu0 0.0
    %v697 = vand.u32 %v59, 4294901760
    %698 = vmatpush1.msra.mxu0 %v697
    %699 = vmatprep.subr.mxu0 0.0
    %700 = vmatpush1.msra.mxu0 0.0
    %701 = vmatprep.subr.mxu0 0.0
    %702 = vmatpush1.msra.mxu0 0.0
    %703 = vmatprep.subr.mxu0 0.0
    %704 = vmatpush1.msra.mxu0 0.0
    %705 = vmatprep.subr.mxu0 0.0
    %706 = vmatpush1.msra.mxu0 0.0
    %707 = vmatprep.subr.mxu0 0.0
    %708 = vmatpush1.msra.mxu0 0.0
    %709 = vmatprep.subr.mxu0 0.0
    %710 = vmatpush1.msra.mxu0 0.0
    %711 = vmatprep.subr.mxu0 0.0
    %712 = vmatpush1.msra.mxu0 0.0
    %713 = vmatprep.subr.mxu0 0.0
    %714 = vmatpush1.msra.mxu0 0.0
    %715 = vmatprep.subr.mxu0 0.0
    %716 = vmatpush1.msra.mxu0 0.0
    %717 = vmatprep.subr.mxu0 0.0
    %718 = vmatpush1.msra.mxu0 0.0
    %719 = vmatprep.subr.mxu0 0.0
    %720 = vmatpush1.msra.mxu0 0.0
    %721 = vmatprep.subr.mxu0 0.0
    %722 = vmatpush1.msra.mxu0 0.0
    %723 = vmatprep.subr.mxu0 0.0
    %724 = vmatpush1.msra.mxu0 0.0
    %725 = vmatprep.subr.mxu0 0.0
    %726 = vmatpush1.msra.mxu0 0.0
    %727 = vmatprep.subr.mxu0 0.0
    %728 = vmatpush1.msra.mxu0 0.0
    %729 = vmatprep.subr.mxu0 0.0
    %730 = vmatpush1.msra.mxu0 0.0
    %731 = vmatprep.mubr.f32.mxu0 0.0
    %v732 = vand.u32 %v42, 4294901760
    %733 = vmatmul.mubr.f32.gmra.mrb[0].mxu0 %v732
    %v734 = vpop.f32.mrb[0].mxu0
    %v735 = vadd.f32 %v642, %v734
    %v736 = vpop.f32.mrb[0].mxu0
    %737 = vmatprep.mubr.f32.mxu0 0.0
    %v738 = vand.u32 %v43, 4294901760
    %739 = vmatmul.mubr.f32.gmra.mrb[0].mxu0 %v738
    %v740 = vpop.f32.mrb[0].mxu0
    %v741 = vadd.f32 %v648, %v740
    %v742 = vpop.f32.mrb[0].mxu0
    %743 = vdwg.mxu0
    %v744 = vmax.f32 %v735, 1e-30
    %v745 = vmax.f32 %v741, 1e-30
    %v746 = vrsqrt.pop %v744
    %v747 = vrsqrt.pop %v745
    %v748 = vmul.f32 %v744, %v746
    %v749 = vmul.f32 %v745, %v747
    %v750 = vtanh.pop %v748
    %v751 = vtanh.pop %v749
    %v752 = vmul.f32 %v750, %v746
    %v753 = vmul.f32 %v751, %v747
    %v754 = vmul.f32 %v40, %v752
    %v755 = vmul.f32 %v41, %v753
    %756 = vst [vmem:[#allocation7] sm:$0xff] %v754
    %757 = vst [vmem:[#allocation7 + $0x8] sm:$0xff] %v755
    // Predicated region
    $region18: #{tpu_custom_call.1} parent=1 // pred_check
      _
    $region19: #{tpu_custom_call.1} parent=1 // pred_check_branch
      %759 = sbr.rel (0) target = $region21
    $region20: #{tpu_custom_call.1} parent=1 // pred_region
      %s761 = ssub.s32 256, 256
      %762 = vsyncadd [#allocation4], %s761
      %s763 = sshll.u32 [#allocation7], 4
      %s764 = int_to_ptr.vmem [resolvable:$true] %s763
      %769 = dma.vmem_to_hbm [thread:$0]  %s764, 256, %s2, [#allocation4], 128, 128, 8
    $region21: #{tpu_custom_call.1} parent=1 // pred_fallthru
      _
    // Predicated region
    $region22: #{tpu_custom_call.1} parent=1 // pred_check
      _
    $region23: #{tpu_custom_call.1} parent=1 // pred_check_branch
      %771 = sbr.rel (0) target = $region25
    $region24: #{tpu_custom_call.1} parent=1 // pred_region
      %772 = dma.done [#allocation4], 256
    $region25: #{tpu_custom_call.1} parent=1 // pred_fallthru
      _
    %773 = vsyncpa [#allocation3], 1
    %774 = vsyncpa [#allocation6], 1
    %775 = vsyncpa [#allocation4], 1

</llo_original>
